<compile_context>
chip_gen: v6e
topology: v6e:2x2x1
jax: 0.10.0
libtpu: 0.0.40
codegen_flags: <defaults>
</compile_context>

<pallas_src>
import functools

import jax
import jax.numpy as jnp
from jax.experimental import pallas as pl
from jax.experimental.pallas import tpu as pltpu

F32 = jnp.float32

# Weight ordering shared by the fused-layer kernels and their wrappers.
_ENC_WEIGHT_ORDER = ("wqk", "bqk", "wv", "bv", "wo", "bo",
                     "g1", "bn1", "w1", "b1", "w2", "b2", "g2", "bn2")
_DEC_WEIGHT_ORDER = ("sa_wqk", "sa_bqk", "sa_wv", "sa_bv", "sa_wo", "sa_bo",
                     "g1", "bn1",
                     "ca_wq", "ca_bq", "ca_wk", "ca_bk", "ca_wv", "ca_bv",
                     "ca_wo", "ca_bo", "g2", "bn2",
                     "w1", "b1", "w2", "b2", "g3", "bn3")


# --------------------------------------------------------------------------- #
# in-kernel helpers (pure functions on loaded arrays)                         #
# --------------------------------------------------------------------------- #
def _ln(x, g, b):
    """LayerNorm over last dim, eps=1e-5 (matches PyTorch)."""
    mu = jnp.mean(x, axis=-1, keepdims=True)
    xc = x - mu
    var = jnp.mean(xc * xc, axis=-1, keepdims=True)
    return xc * jax.lax.rsqrt(var + 1e-5) * g + b


def _attn_heads(q, k, v, wo, bo, bias, nhead, head_dim):
    """Multi-head attention + output projection, fully VMEM resident.

    q: (Sq, D) (already scaled by 1/sqrt(hd) via folded Wq), k/v: (Sk, D),
    wo: (D, D) pre-transposed (in, out), bo: (1, D),
    bias: (1, Sk) additive key-padding bias or None.  Returns (Sq, D).
    The out-projection is accumulated per head (avoids an in-kernel concat).
    """
    acc = None
    for h in range(nhead):
        lo = h * head_dim
        qh = q[:, lo:lo + head_dim]
        kh = k[:, lo:lo + head_dim]
        vh = v[:, lo:lo + head_dim]
        s = jax.lax.dot_general(qh, kh, (((1,), (1,)), ((), ())),
                                preferred_element_type=jnp.float32)  # (Sq, Sk)
        if bias is not None:
            s = s + bias
        s = s - jnp.max(s, axis=-1, keepdims=True)
        p = jnp.exp(s)
        p = p * pl.reciprocal(jnp.sum(p, axis=-1, keepdims=True), approx=True)
        oh = jnp.dot(p, vh, preferred_element_type=jnp.float32)       # (Sq, hd)
        contrib = jnp.dot(oh, wo[lo:lo + head_dim, :],
                          preferred_element_type=jnp.float32)         # (Sq, D)
        acc = contrib if acc is None else acc + contrib
    return acc + bo


# --------------------------------------------------------------------------- #
# fused layer kernels                                                         #
# --------------------------------------------------------------------------- #
def _enc_layer_kernel(x_ref, pos_ref, bias_ref,
                      wqk_ref, bqk_ref, wv_ref, bv_ref, wo_ref, bo_ref,
                      g1_ref, bn1_ref, w1_ref, b1_ref, w2_ref, b2_ref,
                      g2_ref, bn2_ref,
                      o_ref, *, nhead, head_dim):
    x = x_ref[0]                 # (S, D)
    pos = pos_ref[0]             # (S, D)
    bias = bias_ref[0]           # (1, S) key-padding bias
    D = x.shape[-1]

    # --- self attention (q = k = x + pos, v = x) ---
    qk_in = x + pos
    qk = jnp.dot(qk_in, wqk_ref[...], preferred_element_type=jnp.float32) + bqk_ref[...]
    v = jnp.dot(x, wv_ref[...], preferred_element_type=jnp.float32) + bv_ref[...]
    attn = _attn_heads(qk[:, :D], qk[:, D:], v, wo_ref[...], bo_ref[...],
                       bias, nhead, head_dim)

    # residual + LN1 (fused)
    y = _ln(x + attn, g1_ref[...], bn1_ref[...])

    # --- FFN (intermediate stays in VMEM) + residual + LN2 ---
    h = jnp.maximum(
        jnp.dot(y, w1_ref[...], preferred_element_type=jnp.float32) + b1_ref[...], 0.0)
    ffn = jnp.dot(h, w2_ref[...], preferred_element_type=jnp.float32) + b2_ref[...]
    o_ref[0] = _ln(y + ffn, g2_ref[...], bn2_ref[...])


def _dec_layer_kernel(tgt_ref, qpos_ref, mem_ref, mpos_ref, bias_ref,
                      sa_wqk_ref, sa_bqk_ref, sa_wv_ref, sa_bv_ref,
                      sa_wo_ref, sa_bo_ref, g1_ref, bn1_ref,
                      ca_wq_ref, ca_bq_ref, ca_wk_ref, ca_bk_ref,
                      ca_wv_ref, ca_bv_ref, ca_wo_ref, ca_bo_ref,
                      g2_ref, bn2_ref,
                      w1_ref, b1_ref, w2_ref, b2_ref, g3_ref, bn3_ref,
                      o_ref, *, nhead, head_dim):
    tgt = tgt_ref[0]             # (Sq, D)
    qpos = qpos_ref[0]           # (Sq, D)
    mem = mem_ref[0]             # (Sk, D)
    mpos = mpos_ref[0]           # (Sk, D)
    bias = bias_ref[0]           # (1, Sk)
    D = tgt.shape[-1]

    # --- self attention (no mask) ---
    sq_in = tgt + qpos
    qk = jnp.dot(sq_in, sa_wqk_ref[...], preferred_element_type=jnp.float32) + sa_bqk_ref[...]
    v = jnp.dot(tgt, sa_wv_ref[...], preferred_element_type=jnp.float32) + sa_bv_ref[...]
    attn = _attn_heads(qk[:, :D], qk[:, D:], v, sa_wo_ref[...], sa_bo_ref[...],
                       None, nhead, head_dim)
    x = _ln(tgt + attn, g1_ref[...], bn1_ref[...])

    # --- cross attention (q = x + qpos, k = mem + pos, v = mem, key-padding bias) ---
    q = jnp.dot(x + qpos, ca_wq_ref[...], preferred_element_type=jnp.float32) + ca_bq_ref[...]
    k = jnp.dot(mem + mpos, ca_wk_ref[...], preferred_element_type=jnp.float32) + ca_bk_ref[...]
    v2 = jnp.dot(mem, ca_wv_ref[...], preferred_element_type=jnp.float32) + ca_bv_ref[...]
    attn2 = _attn_heads(q, k, v2, ca_wo_ref[...], ca_bo_ref[...],
                        bias, nhead, head_dim)
    x = _ln(x + attn2, g2_ref[...], bn2_ref[...])

    # --- FFN + residual + LN3 ---
    h = jnp.maximum(
        jnp.dot(x, w1_ref[...], preferred_element_type=jnp.float32) + b1_ref[...], 0.0)
    ffn = jnp.dot(h, w2_ref[...], preferred_element_type=jnp.float32) + b2_ref[...]
    o_ref[0] = _ln(x + ffn, g3_ref[...], bn3_ref[...])


# --------------------------------------------------------------------------- #
# small stand-alone kernels (final norms / projections / classifier head)     #
# --------------------------------------------------------------------------- #
def _ln_kernel(x_ref, g_ref, b_ref, o_ref):
    o_ref[...] = _ln(x_ref[...], g_ref[...], b_ref[...])


def _linear_kernel(x_ref, w_ref, b_ref, o_ref):
    o_ref[...] = (jnp.dot(x_ref[...], w_ref[...], preferred_element_type=jnp.float32)
                  + b_ref[...])


def _mlp_kernel(x_ref, w1_ref, b1_ref, w2_ref, b2_ref, o_ref):
    h = jnp.maximum(
        jnp.dot(x_ref[...], w1_ref[...], preferred_element_type=jnp.float32) + b1_ref[...],
        0.0)
    o_ref[...] = (jnp.dot(h, w2_ref[...], preferred_element_type=jnp.float32)
                  + b2_ref[...])


def layernorm(x2d, g, b):
    # Single-block at toy shapes; production would row-tile (>=512 rows, 'parallel').
    N, D = x2d.shape
    return pl.pallas_call(
        _ln_kernel, out_shape=jax.ShapeDtypeStruct((N, D), F32),
    )(x2d.astype(F32), g, b)


def linear(x, w_t, b_row):
    """x: (N, in); w_t: (in, out) pre-transposed; b_row: (1, out)."""
    N = x.shape[0]
    out = w_t.shape[1]
    return pl.pallas_call(
        _linear_kernel, out_shape=jax.ShapeDtypeStruct((N, out), F32),
    )(x.astype(F32), w_t, b_row)


def verb_classifier(vhs, prep):
    N = vhs.shape[0]
    n_verbs = prep["vc2_w"].shape[1]
    return pl.pallas_call(
        _mlp_kernel, out_shape=jax.ShapeDtypeStruct((N, n_verbs), F32),
    )(vhs.astype(F32), prep["vc1_w"], prep["vc1_b"], prep["vc2_w"], prep["vc2_b"])


# --------------------------------------------------------------------------- #
# fused-layer wrappers                                                        #
# --------------------------------------------------------------------------- #
def _rep_spec(arr):
    """Full-array block replicated across the batch grid axis."""
    zeros = (0,) * arr.ndim
    return pl.BlockSpec(arr.shape, lambda b, _z=zeros: _z)


def encoder_layer(x, pos, bias, lp, nhead, head_dim):
    B, S, D = x.shape
    act_spec = pl.BlockSpec((1, S, D), lambda b: (b, 0, 0))
    bias_spec = pl.BlockSpec((1, 1, S), lambda b: (b, 0, 0))
    weights = [lp[k] for k in _ENC_WEIGHT_ORDER]
    kern = functools.partial(_enc_layer_kernel, nhead=nhead, head_dim=head_dim)
    return pl.pallas_call(
        kern,
        grid=(B,),
        in_specs=[act_spec, act_spec, bias_spec] + [_rep_spec(w) for w in weights],
        out_specs=pl.BlockSpec((1, S, D), lambda b: (b, 0, 0)),
        out_shape=jax.ShapeDtypeStruct((B, S, D), F32),
        compiler_params=pltpu.CompilerParams(dimension_semantics=("parallel",)),
    )(x, pos, bias, *weights)


def decoder_layer(tgt, qpos, mem, mpos, bias, lp, nhead, head_dim):
    B, Sq, D = tgt.shape
    Sk = mem.shape[1]
    tgt_spec = pl.BlockSpec((1, Sq, D), lambda b: (b, 0, 0))
    mem_spec = pl.BlockSpec((1, Sk, D), lambda b: (b, 0, 0))
    bias_spec = pl.BlockSpec((1, 1, Sk), lambda b: (b, 0, 0))
    weights = [lp[k] for k in _DEC_WEIGHT_ORDER]
    kern = functools.partial(_dec_layer_kernel, nhead=nhead, head_dim=head_dim)
    return pl.pallas_call(
        kern,
        grid=(B,),
        in_specs=[tgt_spec, tgt_spec, mem_spec, mem_spec, bias_spec]
                 + [_rep_spec(w) for w in weights],
        out_specs=pl.BlockSpec((1, Sq, D), lambda b: (b, 0, 0)),
        out_shape=jax.ShapeDtypeStruct((B, Sq, D), F32),
        compiler_params=pltpu.CompilerParams(dimension_semantics=("parallel",)),
    )(tgt, qpos, mem, mpos, bias, *weights)


# --------------------------------------------------------------------------- #
# full forward pass (mirrors Transformer.forward; batch-major internally)     #
# --------------------------------------------------------------------------- #
def transformer_forward(prep, src, mask, text_src, text_mask,
                        enc_verb_query_embed, verb_query_embed, role_query_embed,
                        pos_embed, text_pos_embed, vidx_ridx, targets,
                        d_model, nhead):
    bs, c, h, w = src.shape
    head_dim = d_model // nhead

    src_b = src.reshape(bs, c, h * w).transpose(0, 2, 1).astype(F32)       # (bs, HW, D)
    pos_b = pos_embed.reshape(bs, c, h * w).transpose(0, 2, 1).astype(F32)  # (bs, HW, D)
    text_pos_b = text_pos_embed.astype(F32)                                 # (bs, L, D)
    combined_pos = jnp.concatenate([text_pos_b, pos_b], axis=1)             # (bs, L+HW, D)

    mask_flat = mask.reshape(bs, -1)                                        # (bs, HW)
    zero_mask = jnp.zeros((bs, 1), bool)
    mem_mask = jnp.concatenate([zero_mask, mask_flat], axis=1)              # (bs, 1+HW)
    mem_bias = (mem_mask.astype(F32) * (-1e9))[:, None, :]                  # (bs, 1, 1+HW)

    # TODO(synk): external frozen text_encoder not defined in the module; stubbed as a
    # deterministic frozen embedding table producing (bs, L, 768).
    encoded_text = prep["text_embed"][text_src]                             # (bs, L, 768)
    L = encoded_text.shape[1]
    text_memory = linear(encoded_text.reshape(bs * L, -1),
                         prep["text_proj_w"], prep["text_proj_b"]).reshape(bs, L, d_model)

    text_mask_b = text_mask.astype(bool)
    combined_mask = jnp.concatenate([text_mask_b, mask_flat], axis=1)       # (bs, L+HW)
    combined_bias = (combined_mask.astype(F32) * (-1e9))[:, None, :]        # (bs, 1, L+HW)

    enc_verb = jnp.broadcast_to(enc_verb_query_embed[None, :, :],
                                (bs, 1, d_model)).astype(F32)
    verb_with_src = jnp.concatenate([enc_verb, src_b], axis=1)              # (bs, 1+HW, D)
    enc_pos = jnp.concatenate([jnp.zeros((bs, 1, d_model), F32), pos_b], axis=1)

    # ----- encoder -----
    x = verb_with_src
    for lp in prep["encoder_layers"]:
        x = encoder_layer(x, enc_pos, mem_bias, lp, nhead, head_dim)
    Se = x.shape[1]
    memory_full = layernorm(x.reshape(bs * Se, d_model),
                            prep["enc_norm_g"], prep["enc_norm_b"]).reshape(bs, Se, d_model)

    vhs = memory_full[:, 0, :]                                              # (bs, D)
    memory = memory_full[:, 1:, :]                                          # (bs, HW, D)

    verb_pred = verb_classifier(vhs, prep)                                  # (bs, n_verbs)

    memory_combined = jnp.concatenate([text_memory, memory], axis=1)        # (bs, L+HW, D)

    # Training path (inference=False): targets provided.
    selected_verb_embed = verb_query_embed[targets["verbs"]]                # (D/2,)
    selected_roles = targets["roles"]                                       # python list
    selected_query_embed = role_query_embed[jnp.array(selected_roles)]      # (R, D/2)
    num_roles = len(selected_roles)
    vr_query = jnp.concatenate(
        [selected_query_embed,
         jnp.tile(selected_verb_embed[None], (num_roles, 1))], axis=-1)     # (R, D)
    vr_query = jnp.broadcast_to(vr_query[None, :, :],
                                (bs, num_roles, d_model)).astype(F32)       # (bs, R, D)
    role_tgt = jnp.zeros_like(vr_query)

    # ----- decoder -----
    y = role_tgt
    for lp in prep["decoder_layers"]:
        y = decoder_layer(y, vr_query, memory_combined, combined_pos,
                          combined_bias, lp, nhead, head_dim)
    y = layernorm(y.reshape(bs * num_roles, d_model),
                  prep["dec_norm_g"], prep["dec_norm_b"]).reshape(bs, num_roles, d_model)

    rhs = y[None]                                                           # (1, bs, R, D)
    return verb_pred, rhs, num_roles


# --------------------------------------------------------------------------- #
# parameter construction (PyTorch layout) + one-time preparation              #
# --------------------------------------------------------------------------- #
def make_params(key, d_model, nhead, num_enc, num_dec, dff, n_verbs, vocab, text_dim=768):
    keys = iter(jax.random.split(key, 256))

    def xavier(shape):
        fan_out, fan_in = shape[0], shape[1]
        limit = (6.0 / (fan_in + fan_out)) ** 0.5
        return jax.random.uniform(next(keys), shape, F32, -limit, limit)

    def mha():
        return dict(
            in_proj_weight=xavier((3 * d_model, d_model)),
            in_proj_bias=jnp.zeros((3 * d_model,), F32),
            out_proj_weight=xavier((d_model, d_model)),
            out_proj_bias=jnp.zeros((d_model,), F32),
        )

    def enc_layer():
        return dict(
            self_attn=mha(),
            lin1_w=xavier((dff, d_model)), lin1_b=jnp.zeros((dff,), F32),
            lin2_w=xavier((d_model, dff)), lin2_b=jnp.zeros((d_model,), F32),
            norm1_g=jnp.ones((d_model,), F32), norm1_b=jnp.zeros((d_model,), F32),
            norm2_g=jnp.ones((d_model,), F32), norm2_b=jnp.zeros((d_model,), F32),
        )

    def dec_layer():
        return dict(
            self_attn=mha(), cross_attn=mha(),
            lin1_w=xavier((dff, d_model)), lin1_b=jnp.zeros((dff,), F32),
            lin2_w=xavier((d_model, dff)), lin2_b=jnp.zeros((d_model,), F32),
            norm1_g=jnp.ones((d_model,), F32), norm1_b=jnp.zeros((d_model,), F32),
            norm2_g=jnp.ones((d_model,), F32), norm2_b=jnp.zeros((d_model,), F32),
            norm3_g=jnp.ones((d_model,), F32), norm3_b=jnp.zeros((d_model,), F32),
        )

    return dict(
        encoder_layers=[enc_layer() for _ in range(num_enc)],
        decoder_layers=[dec_layer() for _ in range(num_dec)],
        enc_norm_g=jnp.ones((d_model,), F32), enc_norm_b=jnp.zeros((d_model,), F32),
        dec_norm_g=jnp.ones((d_model,), F32), dec_norm_b=jnp.zeros((d_model,), F32),
        text_proj_w=xavier((d_model, text_dim)), text_proj_b=jnp.zeros((d_model,), F32),
        vc1_w=xavier((2 * d_model, d_model)), vc1_b=jnp.zeros((2 * d_model,), F32),
        vc2_w=xavier((n_verbs, 2 * d_model)), vc2_b=jnp.zeros((n_verbs,), F32),
        text_embed=jax.random.normal(next(keys), (vocab, text_dim), F32) * 0.02,
    )


def _prep_mha_fused(p, scale):
    """Self-attention where q,k share the same input: fuse [Wq|Wk]; fold scale into Wq."""
    D = p["out_proj_weight"].shape[0]
    wq, wk, wv = jnp.split(p["in_proj_weight"], 3, axis=0)
    bq, bk, bv = jnp.split(p["in_proj_bias"], 3, axis=0)
    wqk = jnp.concatenate([wq.T * scale, wk.T], axis=1).astype(F32)          # (D, 2D)
    bqk = jnp.concatenate([bq * scale, bk], axis=0).reshape(1, 2 * D).astype(F32)
    return dict(
        wqk=wqk, bqk=bqk,
        wv=wv.T.astype(F32), bv=bv.reshape(1, D).astype(F32),
        wo=p["out_proj_weight"].T.astype(F32),
        bo=p["out_proj_bias"].reshape(1, D).astype(F32),
    )


def _prep_mha_cross(p, scale):
    """Cross-attention: q and k/v come from different tensors -> keep Wq/Wk/Wv separate."""
    D = p["out_proj_weight"].shape[0]
    wq, wk, wv = jnp.split(p["in_proj_weight"], 3, axis=0)
    bq, bk, bv = jnp.split(p["in_proj_bias"], 3, axis=0)
    return dict(
        wq=(wq.T * scale).astype(F32), bq=(bq * scale).reshape(1, D).astype(F32),
        wk=wk.T.astype(F32), bk=bk.reshape(1, D).astype(F32),
        wv=wv.T.astype(F32), bv=bv.reshape(1, D).astype(F32),
        wo=p["out_proj_weight"].T.astype(F32),
        bo=p["out_proj_bias"].reshape(1, D).astype(F32),
    )


def prepare_params(params, d_model, nhead):
    """One-time: transpose to (in, out), reshape biases to (1, out), fold q-scale."""
    hd = d_model // nhead
    scale = 1.0 / float(hd) ** 0.5

    def row(v):
        return v.reshape(1, -1).astype(F32)

    enc_layers = []
    for lp in params["encoder_layers"]:
        sa = _prep_mha_fused(lp["self_attn"], scale)
        enc_layers.append(dict(
            **sa,
            g1=row(lp["norm1_g"]), bn1=row(lp["norm1_b"]),
            w1=lp["lin1_w"].T.astype(F32), b1=row(lp["lin1_b"]),
            w2=lp["lin2_w"].T.astype(F32), b2=row(lp["lin2_b"]),
            g2=row(lp["norm2_g"]), bn2=row(lp["norm2_b"]),
        ))

    dec_layers = []
    for lp in params["decoder_layers"]:
        sa = _prep_mha_fused(lp["self_attn"], scale)
        ca = _prep_mha_cross(lp["cross_attn"], scale)
        dec_layers.append(dict(
            sa_wqk=sa["wqk"], sa_bqk=sa["bqk"], sa_wv=sa["wv"], sa_bv=sa["bv"],
            sa_wo=sa["wo"], sa_bo=sa["bo"],
            g1=row(lp["norm1_g"]), bn1=row(lp["norm1_b"]),
            ca_wq=ca["wq"], ca_bq=ca["bq"], ca_wk=ca["wk"], ca_bk=ca["bk"],
            ca_wv=ca["wv"], ca_bv=ca["bv"], ca_wo=ca["wo"], ca_bo=ca["bo"],
            g2=row(lp["norm2_g"]), bn2=row(lp["norm2_b"]),
            w1=lp["lin1_w"].T.astype(F32), b1=row(lp["lin1_b"]),
            w2=lp["lin2_w"].T.astype(F32), b2=row(lp["lin2_b"]),
            g3=row(lp["norm3_g"]), bn3=row(lp["norm3_b"]),
        ))

    return dict(
        encoder_layers=enc_layers, decoder_layers=dec_layers,
        enc_norm_g=row(params["enc_norm_g"]), enc_norm_b=row(params["enc_norm_b"]),
        dec_norm_g=row(params["dec_norm_g"]), dec_norm_b=row(params["dec_norm_b"]),
        text_proj_w=params["text_proj_w"].T.astype(F32),
        text_proj_b=row(params["text_proj_b"]),
        vc1_w=params["vc1_w"].T.astype(F32), vc1_b=row(params["vc1_b"]),
        vc2_w=params["vc2_w"].T.astype(F32), vc2_b=row(params["vc2_b"]),
        text_embed=params["text_embed"],
    )


# --------------------------------------------------------------------------- #
if __name__ == "__main__":
    # small, module-consistent shapes
    d_model, nhead = 32, 4
    num_enc, num_dec, dff = 2, 2, 64
    n_verbs, n_roles_total, vocab = 16, 12, 50
    bs, h, w, L = 2, 4, 4, 8

    root = jax.random.PRNGKey(0)
    pkey, *ik = jax.random.split(root, 10)
    params = make_params(pkey, d_model, nhead, num_enc, num_dec, dff, n_verbs, vocab)
    prep = prepare_params(params, d_model, nhead)

    src = jax.random.normal(ik[0], (bs, d_model, h, w), F32)           # NCHW
    mask = jnp.zeros((bs, h, w), bool)
    text_src = jax.random.randint(ik[1], (bs, L), 0, vocab)
    text_mask = jnp.zeros((bs, L), jnp.int32)
    enc_verb_query_embed = jax.random.normal(ik[2], (1, d_model), F32)
    verb_query_embed = jax.random.normal(ik[3], (n_verbs, d_model // 2), F32)
    role_query_embed = jax.random.normal(ik[4], (n_roles_total, d_model // 2), F32)
    pos_embed = jax.random.normal(ik[5], (bs, d_model, h, w), F32)
    text_pos_embed = jax.random.normal(ik[6], (bs, L, d_model), F32)
    vidx_ridx = [[0, 1], [2, 3, 4]] * (n_verbs // 2)
    targets = {"verbs": 3, "roles": [0, 2, 5]}

    verb_pred, rhs, num_roles = transformer_forward(
        prep, src, mask, text_src, text_mask,
        enc_verb_query_embed, verb_query_embed, role_query_embed,
        pos_embed, text_pos_embed, vidx_ridx, targets,
        d_model=d_model, nhead=nhead)

    jax.block_until_ready((verb_pred, rhs))
    assert verb_pred.shape == (bs, n_verbs)
    assert rhs.shape == (1, bs, num_roles, d_model)
    assert num_roles == len(targets["roles"])
    print("KERNEL_OK")
</pallas_src>

<mosaic_0001>
module attributes {stable_mosaic.version = 11 : i64} {
  func.func @_linear_kernel(%arg0: memref<16x768xf32, #tpu.memory_space<vmem>>, %arg1: memref<768x32xf32, #tpu.memory_space<vmem>>, %arg2: memref<1x32xf32, #tpu.memory_space<vmem>>, %arg3: memref<16x32xf32, #tpu.memory_space<vmem>>) attributes {dimension_semantics = [], scalar_prefetch = 0 : i64, scratch_operands = 0 : i64, tpu.core_type = #tpu.core_type<tc>} {
    %c0 = arith.constant 0 : index
    %c0_0 = arith.constant 0 : index
    %0 = vector.load %arg0[%c0, %c0_0] : memref<16x768xf32, #tpu.memory_space<vmem>>, vector<16x768xf32>
    %c0_1 = arith.constant 0 : index
    %c0_2 = arith.constant 0 : index
    %1 = vector.load %arg1[%c0_1, %c0_2] : memref<768x32xf32, #tpu.memory_space<vmem>>, vector<768x32xf32>
    %cst = arith.constant dense<0.000000e+00> : vector<16x32xf32>
    %2 = tpu.matmul %0, %1, %cst {dimension_numbers = #tpu.dot_dimension_numbers<[1], [0], [0], [1], [0, 0, 1, 1], [], []>} : vector<16x768xf32>, vector<768x32xf32>, vector<16x32xf32> -> vector<16x32xf32>
    %c0_3 = arith.constant 0 : index
    %c0_4 = arith.constant 0 : index
    %3 = vector.load %arg2[%c0_3, %c0_4] : memref<1x32xf32, #tpu.memory_space<vmem>>, vector<1x32xf32>
    %4 = vector.broadcast %3 : vector<1x32xf32> to vector<16x32xf32>
    %5 = arith.addf %2, %4 : vector<16x32xf32>
    %c0_5 = arith.constant 0 : index
    %c0_6 = arith.constant 0 : index
    %6 = vector.load %arg3[%c0_5, %c0_6] : memref<16x32xf32, #tpu.memory_space<vmem>>, vector<16x32xf32>
    tpu.vector_store %arg3[%c0_5, %c0_6], %5 {strides = array<i32>} : memref<16x32xf32, #tpu.memory_space<vmem>>, vector<16x32xf32>,
    return
  }
}

</mosaic_0001>

<llo_original>
// kernel: tpu_custom_call.1
$region0: #{tpu_custom_call.1}
  #allocation0 [shape = 'u32[]', space=smem, size = 0x4, offset = 0x4, fixed_abs, tag = 'smem constant byte address 0x4 - core index']
  #allocation1 [shape = 'u32[144,128]{1,0:T(1,128)}', space=vmem, size = 0x12000, scoped, tag = 'internal scratch']
  %s0 = inlined_call_operand.vmem [shape: f32[16,768], index: 0, kind: input, shape index: {}]
  %s1 = inlined_call_operand.vmem [shape: f32[768,32], index: 1, kind: input, shape index: {}]
  %s2 = inlined_call_operand.vmem [shape: f32[1,32], index: 2, kind: input, shape index: {}]
  %s3 = inlined_call_operand.hbm [shape: f32[16,32], index: 3, kind: output, shape index: {}]
  %s4 = sld [smem:[#allocation0]]
  $region22: #{tpu_custom_call.1} parent=0
    _
  %s6 = ssub.s32 1, %s4
  %s7 = scalar_select 0, %s6, %s4
  $region1: #{tpu_custom_call.1} parent=0
    #allocation2 [shape = 'u8[8192]{0}', space=vmem, size = 0x2000, scoped, tag = 'output window, operand 0, single buffered']
    #allocation3 [shape = 's32[1]{0}', space=sflag, size = 0x4, scoped, tag = 'scoped memory for tpu_custom_call.1']
    %8 = vsyncpa [#allocation3], 0
    // Predicated region
    $region2: #{tpu_custom_call.1} parent=1 // pred_check
      _
    $region3: #{tpu_custom_call.1} parent=1 // pred_check_branch
      %10 = sbr.rel (0) target = $region5
    $region4: #{tpu_custom_call.1} parent=1 // pred_region
      _
    $region5: #{tpu_custom_call.1} parent=1 // pred_fallthru
      _
    // Predicated region
    $region6: #{tpu_custom_call.1} parent=1 // pred_check
      _
    $region7: #{tpu_custom_call.1} parent=1 // pred_check_branch
      %12 = sbr.rel (0) target = $region9
    $region8: #{tpu_custom_call.1} parent=1 // pred_region
      _
    $region9: #{tpu_custom_call.1} parent=1 // pred_fallthru
      _
    // Predicated region
    $region10: #{tpu_custom_call.1} parent=1 // pred_check
      _
    $region11: #{tpu_custom_call.1} parent=1 // pred_check_branch
      %14 = sbr.rel (0) target = $region13
    $region12: #{tpu_custom_call.1} parent=1 // pred_region
      _
    $region13: #{tpu_custom_call.1} parent=1 // pred_fallthru
      _
    %v15 = vld [vmem:[%s0] sm:$0xff]
    %v16 = vld [vmem:[%s0 + $0x8] sm:$0xff]
    %v17 = vld [vmem:[%s0 + $0x10] sm:$0xff]
    %v18 = vld [vmem:[%s0 + $0x18] sm:$0xff]
    %v19 = vld [vmem:[%s0 + $0x20] sm:$0xff]
    %v20 = vld [vmem:[%s0 + $0x28] sm:$0xff]
    %v21 = vld [vmem:[%s0 + $0x30] sm:$0xff]
    %v22 = vld [vmem:[%s0 + $0x38] sm:$0xff]
    %v23 = vld [vmem:[%s0 + $0x40] sm:$0xff]
    %v24 = vld [vmem:[%s0 + $0x48] sm:$0xff]
    %v25 = vld [vmem:[%s0 + $0x50] sm:$0xff]
    %v26 = vld [vmem:[%s0 + $0x58] sm:$0xff]
    %v27 = vld [vmem:[%s1] sm:$0xff]
    %v28 = vld [vmem:[%s1 + $0x8] sm:$0xff]
    %v29 = vld [vmem:[%s1 + $0x10] sm:$0xff]
    %v30 = vld [vmem:[%s1 + $0x18] sm:$0xff]
    %v31 = vld [vmem:[%s1 + $0x20] sm:$0xff]
    %v32 = vld [vmem:[%s1 + $0x28] sm:$0xff]
    %v33 = vld [vmem:[%s1 + $0x30] sm:$0xff]
    %v34 = vld [vmem:[%s1 + $0x38] sm:$0xff]
    %v35 = vld [vmem:[%s1 + $0x40] sm:$0xff]
    %v36 = vld [vmem:[%s1 + $0x48] sm:$0xff]
    %v37 = vld [vmem:[%s1 + $0x50] sm:$0xff]
    %v38 = vld [vmem:[%s1 + $0x58] sm:$0xff]
    %v39 = vld [vmem:[%s1 + $0x60] sm:$0xff]
    %v40 = vld [vmem:[%s1 + $0x68] sm:$0xff]
    %v41 = vld [vmem:[%s1 + $0x70] sm:$0xff]
    %v42 = vld [vmem:[%s1 + $0x78] sm:$0xff]
    %v43 = vld [vmem:[%s1 + $0x80] sm:$0xff]
    %v44 = vld [vmem:[%s1 + $0x88] sm:$0xff]
    %v45 = vld [vmem:[%s1 + $0x90] sm:$0xff]
    %v46 = vld [vmem:[%s1 + $0x98] sm:$0xff]
    %v47 = vld [vmem:[%s1 + $0xa0] sm:$0xff]
    %v48 = vld [vmem:[%s1 + $0xa8] sm:$0xff]
    %v49 = vld [vmem:[%s1 + $0xb0] sm:$0xff]
    %v50 = vld [vmem:[%s1 + $0xb8] sm:$0xff]
    %v51 = vld [vmem:[%s1 + $0xc0] sm:$0xff]
    %v52 = vld [vmem:[%s1 + $0xc8] sm:$0xff]
    %v53 = vld [vmem:[%s1 + $0xd0] sm:$0xff]
    %v54 = vld [vmem:[%s1 + $0xd8] sm:$0xff]
    %v55 = vld [vmem:[%s1 + $0xe0] sm:$0xff]
    %v56 = vld [vmem:[%s1 + $0xe8] sm:$0xff]
    %v57 = vld [vmem:[%s1 + $0xf0] sm:$0xff]
    %v58 = vld [vmem:[%s1 + $0xf8] sm:$0xff]
    %v59 = vld [vmem:[%s1 + $0x100] sm:$0xff]
    %v60 = vld [vmem:[%s1 + $0x108] sm:$0xff]
    %v61 = vld [vmem:[%s1 + $0x110] sm:$0xff]
    %v62 = vld [vmem:[%s1 + $0x118] sm:$0xff]
    %v63 = vld [vmem:[%s1 + $0x120] sm:$0xff]
    %v64 = vld [vmem:[%s1 + $0x128] sm:$0xff]
    %v65 = vld [vmem:[%s1 + $0x130] sm:$0xff]
    %v66 = vld [vmem:[%s1 + $0x138] sm:$0xff]
    %v67 = vld [vmem:[%s1 + $0x140] sm:$0xff]
    %v68 = vld [vmem:[%s1 + $0x148] sm:$0xff]
    %v69 = vld [vmem:[%s1 + $0x150] sm:$0xff]
    %v70 = vld [vmem:[%s1 + $0x158] sm:$0xff]
    %v71 = vld [vmem:[%s1 + $0x160] sm:$0xff]
    %v72 = vld [vmem:[%s1 + $0x168] sm:$0xff]
    %v73 = vld [vmem:[%s1 + $0x170] sm:$0xff]
    %v74 = vld [vmem:[%s1 + $0x178] sm:$0xff]
    %v75 = vld [vmem:[%s1 + $0x180] sm:$0xff]
    %v76 = vld [vmem:[%s1 + $0x188] sm:$0xff]
    %v77 = vld [vmem:[%s1 + $0x190] sm:$0xff]
    %v78 = vld [vmem:[%s1 + $0x198] sm:$0xff]
    %v79 = vld [vmem:[%s1 + $0x1a0] sm:$0xff]
    %v80 = vld [vmem:[%s1 + $0x1a8] sm:$0xff]
    %v81 = vld [vmem:[%s1 + $0x1b0] sm:$0xff]
    %v82 = vld [vmem:[%s1 + $0x1b8] sm:$0xff]
    %v83 = vld [vmem:[%s1 + $0x1c0] sm:$0xff]
    %v84 = vld [vmem:[%s1 + $0x1c8] sm:$0xff]
    %v85 = vld [vmem:[%s1 + $0x1d0] sm:$0xff]
    %v86 = vld [vmem:[%s1 + $0x1d8] sm:$0xff]
    %v87 = vld [vmem:[%s1 + $0x1e0] sm:$0xff]
    %v88 = vld [vmem:[%s1 + $0x1e8] sm:$0xff]
    %v89 = vld [vmem:[%s1 + $0x1f0] sm:$0xff]
    %v90 = vld [vmem:[%s1 + $0x1f8] sm:$0xff]
    %v91 = vld [vmem:[%s1 + $0x200] sm:$0xff]
    %v92 = vld [vmem:[%s1 + $0x208] sm:$0xff]
    %v93 = vld [vmem:[%s1 + $0x210] sm:$0xff]
    %v94 = vld [vmem:[%s1 + $0x218] sm:$0xff]
    %v95 = vld [vmem:[%s1 + $0x220] sm:$0xff]
    %v96 = vld [vmem:[%s1 + $0x228] sm:$0xff]
    %v97 = vld [vmem:[%s1 + $0x230] sm:$0xff]
    %v98 = vld [vmem:[%s1 + $0x238] sm:$0xff]
    %v99 = vld [vmem:[%s1 + $0x240] sm:$0xff]
    %v100 = vld [vmem:[%s1 + $0x248] sm:$0xff]
    %v101 = vld [vmem:[%s1 + $0x250] sm:$0xff]
    %v102 = vld [vmem:[%s1 + $0x258] sm:$0xff]
    %v103 = vld [vmem:[%s1 + $0x260] sm:$0xff]
    %v104 = vld [vmem:[%s1 + $0x268] sm:$0xff]
    %v105 = vld [vmem:[%s1 + $0x270] sm:$0xff]
    %v106 = vld [vmem:[%s1 + $0x278] sm:$0xff]
    %v107 = vld [vmem:[%s1 + $0x280] sm:$0xff]
    %v108 = vld [vmem:[%s1 + $0x288] sm:$0xff]
    %v109 = vld [vmem:[%s1 + $0x290] sm:$0xff]
    %v110 = vld [vmem:[%s1 + $0x298] sm:$0xff]
    %v111 = vld [vmem:[%s1 + $0x2a0] sm:$0xff]
    %v112 = vld [vmem:[%s1 + $0x2a8] sm:$0xff]
    %v113 = vld [vmem:[%s1 + $0x2b0] sm:$0xff]
    %v114 = vld [vmem:[%s1 + $0x2b8] sm:$0xff]
    %v115 = vld [vmem:[%s1 + $0x2c0] sm:$0xff]
    %v116 = vld [vmem:[%s1 + $0x2c8] sm:$0xff]
    %v117 = vld [vmem:[%s1 + $0x2d0] sm:$0xff]
    %v118 = vld [vmem:[%s1 + $0x2d8] sm:$0xff]
    %v119 = vld [vmem:[%s1 + $0x2e0] sm:$0xff]
    %v120 = vld [vmem:[%s1 + $0x2e8] sm:$0xff]
    %v121 = vld [vmem:[%s1 + $0x2f0] sm:$0xff]
    %v122 = vld [vmem:[%s1 + $0x2f8] sm:$0xff]
    %v123 = vld [vmem:[%s2] sm:$0x1]
    %v125 = vlaneseq
    %v126 = vshrl.u32 %v125, 7
    %v127 = vsub.s32 0, %v126
    %v128 = vrot.slane %v123, %v127
    %130 = vmatprep.subr.mxu0 0.0
    %131 = vmatpush1.msra.mxu0 %v42
    %132 = vmatprep.subr.mxu0 0.0
    %133 = vmatpush1.msra.mxu0 %v41
    %134 = vmatprep.subr.mxu0 0.0
    %135 = vmatpush1.msra.mxu0 %v40
    %136 = vmatprep.subr.mxu0 0.0
    %137 = vmatpush1.msra.mxu0 %v39
    %138 = vmatprep.subr.mxu0 0.0
    %139 = vmatpush1.msra.mxu0 %v38
    %140 = vmatprep.subr.mxu0 0.0
    %141 = vmatpush1.msra.mxu0 %v37
    %142 = vmatprep.subr.mxu0 0.0
    %143 = vmatpush1.msra.mxu0 %v36
    %144 = vmatprep.subr.mxu0 0.0
    %145 = vmatpush1.msra.mxu0 %v35
    %146 = vmatprep.subr.mxu0 0.0
    %147 = vmatpush1.msra.mxu0 %v34
    %148 = vmatprep.subr.mxu0 0.0
    %149 = vmatpush1.msra.mxu0 %v33
    %150 = vmatprep.subr.mxu0 0.0
    %151 = vmatpush1.msra.mxu0 %v32
    %152 = vmatprep.subr.mxu0 0.0
    %153 = vmatpush1.msra.mxu0 %v31
    %154 = vmatprep.subr.mxu0 0.0
    %155 = vmatpush1.msra.mxu0 %v30
    %156 = vmatprep.subr.mxu0 0.0
    %157 = vmatpush1.msra.mxu0 %v29
    %158 = vmatprep.subr.mxu0 0.0
    %159 = vmatpush1.msra.mxu0 %v28
    %160 = vmatprep.subr.mxu0 0.0
    %161 = vmatpush1.msra.mxu0 %v27
    %162 = vmatprep.subr.mxu0 0.0
    %163 = vmatpush2.msra.mxu0 %v58
    %164 = vmatprep.subr.mxu0 0.0
    %165 = vmatpush2.msra.mxu0 %v57
    %166 = vmatprep.subr.mxu0 0.0
    %167 = vmatpush2.msra.mxu0 %v56
    %168 = vmatprep.subr.mxu0 0.0
    %169 = vmatpush2.msra.mxu0 %v55
    %170 = vmatprep.subr.mxu0 0.0
    %171 = vmatpush2.msra.mxu0 %v54
    %172 = vmatprep.subr.mxu0 0.0
    %173 = vmatpush2.msra.mxu0 %v53
    %174 = vmatprep.subr.mxu0 0.0
    %175 = vmatpush2.msra.mxu0 %v52
    %176 = vmatprep.subr.mxu0 0.0
    %177 = vmatpush2.msra.mxu0 %v51
    %178 = vmatprep.subr.mxu0 0.0
    %179 = vmatpush2.msra.mxu0 %v50
    %180 = vmatprep.subr.mxu0 0.0
    %181 = vmatpush2.msra.mxu0 %v49
    %182 = vmatprep.subr.mxu0 0.0
    %183 = vmatpush2.msra.mxu0 %v48
    %184 = vmatprep.subr.mxu0 0.0
    %185 = vmatpush2.msra.mxu0 %v47
    %186 = vmatprep.subr.mxu0 0.0
    %187 = vmatpush2.msra.mxu0 %v46
    %188 = vmatprep.subr.mxu0 0.0
    %189 = vmatpush2.msra.mxu0 %v45
    %190 = vmatprep.subr.mxu0 0.0
    %191 = vmatpush2.msra.mxu0 %v44
    %192 = vmatprep.subr.mxu0 0.0
    %193 = vmatpush2.msra.mxu0 %v43
    %194 = vmatprep.mubr.f32.mxu0 %v16
    %195 = vmatmul.mubr.f32.gmra.mxu0 %v15
    %v196 = vpop.f32.mrf.mxu0
    %v197 = vadd.f32 %v128, %v196
    %v198 = vpop.f32.mrf.mxu0
    %199 = vmatprep.mubr.f32.mxu0 %v22
    %200 = vmatmul.mubr.f32.gmra.mxu0 %v21
    %v201 = vpop.f32.mrf.mxu0
    %v202 = vadd.f32 %v128, %v201
    %v203 = vpop.f32.mrf.mxu0
    %204 = vdwg.mxu0
    %205 = vmatprep.subr.mxu0 0.0
    %206 = vmatpush1.msra.mxu0 %v74
    %207 = vmatprep.subr.mxu0 0.0
    %208 = vmatpush1.msra.mxu0 %v73
    %209 = vmatprep.subr.mxu0 0.0
    %210 = vmatpush1.msra.mxu0 %v72
    %211 = vmatprep.subr.mxu0 0.0
    %212 = vmatpush1.msra.mxu0 %v71
    %213 = vmatprep.subr.mxu0 0.0
    %214 = vmatpush1.msra.mxu0 %v70
    %215 = vmatprep.subr.mxu0 0.0
    %216 = vmatpush1.msra.mxu0 %v69
    %217 = vmatprep.subr.mxu0 0.0
    %218 = vmatpush1.msra.mxu0 %v68
    %219 = vmatprep.subr.mxu0 0.0
    %220 = vmatpush1.msra.mxu0 %v67
    %221 = vmatprep.subr.mxu0 0.0
    %222 = vmatpush1.msra.mxu0 %v66
    %223 = vmatprep.subr.mxu0 0.0
    %224 = vmatpush1.msra.mxu0 %v65
    %225 = vmatprep.subr.mxu0 0.0
    %226 = vmatpush1.msra.mxu0 %v64
    %227 = vmatprep.subr.mxu0 0.0
    %228 = vmatpush1.msra.mxu0 %v63
    %229 = vmatprep.subr.mxu0 0.0
    %230 = vmatpush1.msra.mxu0 %v62
    %231 = vmatprep.subr.mxu0 0.0
    %232 = vmatpush1.msra.mxu0 %v61
    %233 = vmatprep.subr.mxu0 0.0
    %234 = vmatpush1.msra.mxu0 %v60
    %235 = vmatprep.subr.mxu0 0.0
    %236 = vmatpush1.msra.mxu0 %v59
    %237 = vmatprep.subr.mxu0 0.0
    %238 = vmatpush2.msra.mxu0 %v90
    %239 = vmatprep.subr.mxu0 0.0
    %240 = vmatpush2.msra.mxu0 %v89
    %241 = vmatprep.subr.mxu0 0.0
    %242 = vmatpush2.msra.mxu0 %v88
    %243 = vmatprep.subr.mxu0 0.0
    %244 = vmatpush2.msra.mxu0 %v87
    %245 = vmatprep.subr.mxu0 0.0
    %246 = vmatpush2.msra.mxu0 %v86
    %247 = vmatprep.subr.mxu0 0.0
    %248 = vmatpush2.msra.mxu0 %v85
    %249 = vmatprep.subr.mxu0 0.0
    %250 = vmatpush2.msra.mxu0 %v84
    %251 = vmatprep.subr.mxu0 0.0
    %252 = vmatpush2.msra.mxu0 %v83
    %253 = vmatprep.subr.mxu0 0.0
    %254 = vmatpush2.msra.mxu0 %v82
    %255 = vmatprep.subr.mxu0 0.0
    %256 = vmatpush2.msra.mxu0 %v81
    %257 = vmatprep.subr.mxu0 0.0
    %258 = vmatpush2.msra.mxu0 %v80
    %259 = vmatprep.subr.mxu0 0.0
    %260 = vmatpush2.msra.mxu0 %v79
    %261 = vmatprep.subr.mxu0 0.0
    %262 = vmatpush2.msra.mxu0 %v78
    %263 = vmatprep.subr.mxu0 0.0
    %264 = vmatpush2.msra.mxu0 %v77
    %265 = vmatprep.subr.mxu0 0.0
    %266 = vmatpush2.msra.mxu0 %v76
    %267 = vmatprep.subr.mxu0 0.0
    %268 = vmatpush2.msra.mxu0 %v75
    %269 = vmatprep.mubr.f32.mxu0 %v18
    %270 = vmatmul.mubr.f32.gmra.mxu0 %v17
    %v271 = vpop.f32.mrf.mxu0
    %v272 = vadd.f32 %v197, %v271
    %v273 = vpop.f32.mrf.mxu0
    %274 = vmatprep.mubr.f32.mxu0 %v24
    %275 = vmatmul.mubr.f32.gmra.mxu0 %v23
    %v276 = vpop.f32.mrf.mxu0
    %v277 = vadd.f32 %v202, %v276
    %v278 = vpop.f32.mrf.mxu0
    %279 = vdwg.mxu0
    %280 = vmatprep.subr.mxu0 0.0
    %281 = vmatpush1.msra.mxu0 %v106
    %282 = vmatprep.subr.mxu0 0.0
    %283 = vmatpush1.msra.mxu0 %v105
    %284 = vmatprep.subr.mxu0 0.0
    %285 = vmatpush1.msra.mxu0 %v104
    %286 = vmatprep.subr.mxu0 0.0
    %287 = vmatpush1.msra.mxu0 %v103
    %288 = vmatprep.subr.mxu0 0.0
    %289 = vmatpush1.msra.mxu0 %v102
    %290 = vmatprep.subr.mxu0 0.0
    %291 = vmatpush1.msra.mxu0 %v101
    %292 = vmatprep.subr.mxu0 0.0
    %293 = vmatpush1.msra.mxu0 %v100
    %294 = vmatprep.subr.mxu0 0.0
    %295 = vmatpush1.msra.mxu0 %v99
    %296 = vmatprep.subr.mxu0 0.0
    %297 = vmatpush1.msra.mxu0 %v98
    %298 = vmatprep.subr.mxu0 0.0
    %299 = vmatpush1.msra.mxu0 %v97
    %300 = vmatprep.subr.mxu0 0.0
    %301 = vmatpush1.msra.mxu0 %v96
    %302 = vmatprep.subr.mxu0 0.0
    %303 = vmatpush1.msra.mxu0 %v95
    %304 = vmatprep.subr.mxu0 0.0
    %305 = vmatpush1.msra.mxu0 %v94
    %306 = vmatprep.subr.mxu0 0.0
    %307 = vmatpush1.msra.mxu0 %v93
    %308 = vmatprep.subr.mxu0 0.0
    %309 = vmatpush1.msra.mxu0 %v92
    %310 = vmatprep.subr.mxu0 0.0
    %311 = vmatpush1.msra.mxu0 %v91
    %312 = vmatprep.subr.mxu0 0.0
    %313 = vmatpush2.msra.mxu0 %v122
    %314 = vmatprep.subr.mxu0 0.0
    %315 = vmatpush2.msra.mxu0 %v121
    %316 = vmatprep.subr.mxu0 0.0
    %317 = vmatpush2.msra.mxu0 %v120
    %318 = vmatprep.subr.mxu0 0.0
    %319 = vmatpush2.msra.mxu0 %v119
    %320 = vmatprep.subr.mxu0 0.0
    %321 = vmatpush2.msra.mxu0 %v118
    %322 = vmatprep.subr.mxu0 0.0
    %323 = vmatpush2.msra.mxu0 %v117
    %324 = vmatprep.subr.mxu0 0.0
    %325 = vmatpush2.msra.mxu0 %v116
    %326 = vmatprep.subr.mxu0 0.0
    %327 = vmatpush2.msra.mxu0 %v115
    %328 = vmatprep.subr.mxu0 0.0
    %329 = vmatpush2.msra.mxu0 %v114
    %330 = vmatprep.subr.mxu0 0.0
    %331 = vmatpush2.msra.mxu0 %v113
    %332 = vmatprep.subr.mxu0 0.0
    %333 = vmatpush2.msra.mxu0 %v112
    %334 = vmatprep.subr.mxu0 0.0
    %335 = vmatpush2.msra.mxu0 %v111
    %336 = vmatprep.subr.mxu0 0.0
    %337 = vmatpush2.msra.mxu0 %v110
    %338 = vmatprep.subr.mxu0 0.0
    %339 = vmatpush2.msra.mxu0 %v109
    %340 = vmatprep.subr.mxu0 0.0
    %341 = vmatpush2.msra.mxu0 %v108
    %342 = vmatprep.subr.mxu0 0.0
    %343 = vmatpush2.msra.mxu0 %v107
    %344 = vmatprep.mubr.f32.mxu0 %v20
    %345 = vmatmul.mubr.f32.gmra.mxu0 %v19
    %v346 = vpop.f32.mrf.mxu0
    %v347 = vadd.f32 %v272, %v346
    %v348 = vpop.f32.mrf.mxu0
    %349 = vmatprep.mubr.f32.mxu0 %v26
    %350 = vmatmul.mubr.f32.gmra.mxu0 %v25
    %v351 = vpop.f32.mrf.mxu0
    %v352 = vadd.f32 %v277, %v351
    %v353 = vpop.f32.mrf.mxu0
    %354 = vdwg.mxu0
    %vm355 = vcmask 261120
    %356 = vst.msk [vmem:[#allocation2] sm:$0xff] %vm355, %v347
    %357 = vst.msk [vmem:[#allocation2 + $0x8] sm:$0xff] %vm355, %v352
    // Predicated region
    $region14: #{tpu_custom_call.1} parent=1 // pred_check
      _
    $region15: #{tpu_custom_call.1} parent=1 // pred_check_branch
      %359 = sbr.rel (0) target = $region17
    $region16: #{tpu_custom_call.1} parent=1 // pred_region
      %s361 = ssub.s32 256, 256
      %362 = vsyncadd [#allocation3], %s361
      %s363 = sshll.u32 [#allocation2], 4
      %s364 = int_to_ptr.vmem [resolvable:$true] %s363
      %369 = dma.vmem_to_hbm [thread:$0]  %s364, 256, %s3, [#allocation3], 128, 128, 8
    $region17: #{tpu_custom_call.1} parent=1 // pred_fallthru
      _
    // Predicated region
    $region18: #{tpu_custom_call.1} parent=1 // pred_check
      _
    $region19: #{tpu_custom_call.1} parent=1 // pred_check_branch
      %371 = sbr.rel (0) target = $region21
    $region20: #{tpu_custom_call.1} parent=1 // pred_region
      %372 = dma.done [#allocation3], 256
    $region21: #{tpu_custom_call.1} parent=1 // pred_fallthru
      _
    %373 = vsyncpa [#allocation3], 1

</llo_original>
